<compile_context>
chip_gen: v7x
topology: tpu7x:2x2x1
jax: 0.10.0
libtpu: 0.0.40
codegen_flags: <defaults>
</compile_context>

<pallas_src>
import functools

import jax
import jax.numpy as jnp
from jax.experimental import pallas as pl
from jax.experimental.pallas import tpu as pltpu


# -----------------------------------------------------------------------------
# Kernels
# -----------------------------------------------------------------------------

def _collapsed_kernel(ids_ref, x_ref, w_ref, *rest, has_bias):
    """grid = (P, N//tn).  One full-K MXU dot per step, no accumulator.

    x_ref: (1, M, K)   activations of present-group g (resident across n)
    w_ref: (1, K, tn)  pre-transposed weight column of real group ids[g]
    b_ref: (1, 1, tn)  bias tile                                 (if has_bias)
    o_ref: (1, M, tn)  output tile
    """
    del ids_ref
    if has_bias:
        b_ref, o_ref = rest
    else:
        (o_ref,) = rest
    acc = jnp.dot(x_ref[0], w_ref[0], preferred_element_type=jnp.float32)
    if has_bias:
        acc = acc + b_ref[0].astype(jnp.float32)
    o_ref[0] = acc.astype(o_ref.dtype)


def _ktiled_kernel(ids_ref, x_ref, w_ref, *rest, tk, x_resident, has_bias):
    """grid = (P, N//tn, K//tk).  f32 accumulator resident across the K axis.

    x_ref: (1, M, K) if x_resident else (1, M, tk)
    w_ref: (1, tk, tn)
    b_ref: (1, 1, tn)  k-invariant bias tile                     (if has_bias)
    o_ref: (1, M, tn)  same block for every k (K-invariant output)
    acc_ref: (M, tn) f32 scratch
    """
    del ids_ref
    if has_bias:
        b_ref, o_ref, acc_ref = rest
    else:
        o_ref, acc_ref = rest
    k = pl.program_id(2)

    @pl.when(k == 0)
    def _zero():
        acc_ref[...] = jnp.zeros_like(acc_ref)

    if x_resident:
        # Full-K activations live in VMEM; slice this step's tk chunk in place.
        x_blk = x_ref[0, :, pl.ds(pl.multiple_of(k * tk, 128), tk)]
    else:
        x_blk = x_ref[0]
    acc_ref[...] += jnp.dot(x_blk, w_ref[0], preferred_element_type=jnp.float32)

    @pl.when(k == pl.num_programs(2) - 1)
    def _finalize():
        out = acc_ref[...]
        if has_bias:
            out = out + b_ref[0].astype(jnp.float32)
        o_ref[0] = out.astype(o_ref.dtype)


# -----------------------------------------------------------------------------
# Tile / VMEM planning
# -----------------------------------------------------------------------------

def _tile_candidates(dim, preferred, align=128):
    """Tile sizes for `dim`: the full dim (if <= preferred) plus every
    align-multiple divisor <= preferred, in decreasing order.  Falls back to
    the full dim when no aligned divisor exists; the VMEM fit check then fails
    loudly instead of silently blowing VMEM."""
    cands = []
    if dim <= preferred:
        cands.append(dim)
    t = min(preferred, dim)
    t -= t % align
    while t >= align:
        if dim % t == 0 and t != dim:
            cands.append(t)
        t -= align
    if not cands:
        cands.append(dim)
    return cands


def _vmem_capacity_bytes():
    """Physical VMEM per TensorCore (v5e/v6e: 128 MiB, v7x: 64 MiB)."""
    try:
        info = pltpu.get_tpu_info()
        for name in ("vmem_capacity_bytes", "vmem_size_bytes", "vmem_bytes"):
            v = getattr(info, name, None)
            if v:
                return int(v)
    except Exception:
        pass
    return 64 << 20  # conservative default (v7x)


def _collapsed_bytes(M, K, tn, isz, has_bias):
    # x, weight column and output tile are each double-buffered by the pipeline.
    need = 2 * (M * K + K * tn + M * tn) * isz
    if has_bias:
        need += 2 * 8 * tn * isz          # (1,1,tn) block, sublane-padded
    return need


def _ktiled_bytes(M, K, tk, tn, isz, has_bias, x_resident):
    x_bytes = (M * K) if x_resident else (M * tk)
    need = 2 * (x_bytes + tk * tn + M * tn) * isz + M * tn * 4   # + f32 acc
    if has_bias:
        need += 2 * 8 * tn * isz
    return need


def _select_plan(M, K, N, isz, has_bias, budget):
    # Preferred: collapsed-K plan (single dot per step, x resident per group).
    for tn in _tile_candidates(N, 512):
        need = _collapsed_bytes(M, K, tn, isz, has_bias)
        if need <= budget:
            return {"kind": "collapsed", "tn": tn, "bytes": need}
    # Fallback: K-tiled accumulator; keep x resident (full K) when it fits.
    for x_resident in (True, False):
        for tn in _tile_candidates(N, 512):
            for tk in _tile_candidates(K, 2048):
                need = _ktiled_bytes(M, K, tk, tn, isz, has_bias, x_resident)
                if need <= budget:
                    return {"kind": "ktiled", "tn": tn, "tk": tk,
                            "x_resident": x_resident, "bytes": need}
    raise ValueError(
        f"group_row_parallel_linear: no tile plan fits the VMEM budget "
        f"({budget} bytes) for M={M}, K={K}, N={N}; reduce the per-group "
        f"token count or raise the budget.")


# -----------------------------------------------------------------------------
# Wrapper
# -----------------------------------------------------------------------------

@functools.partial(jax.jit, static_argnames=("has_bias", "vmem_budget"))
def group_row_parallel_linear(group_ids, xs_stacked, weight_t, bias=None, *,
                              has_bias=True, vmem_budget=None):
    """Grouped GEMM: out[p] = xs_stacked[p] @ weight_t[group_ids[p]] (+ bias).

    group_ids:  (P,) int32 indices of the present groups (scalar-prefetched).
    xs_stacked: (P, M, K) activations of the present groups.
    weight_t:   (G, K, N) pre-transposed weights (PyTorch weight is (G, N, K)).
    bias:       (G, N) or None.
    Returns (P, M, N) in xs_stacked.dtype.
    """
    P, M, K = xs_stacked.shape
    G, Kw, N = weight_t.shape
    assert Kw == K, (Kw, K)
    isz = xs_stacked.dtype.itemsize

    cap = _vmem_capacity_bytes()
    # ~3/8 of physical VMEM for our pipelined buffers: ~24 MiB on v7x (64 MiB
    # physical), 48 MiB on v5e/v6e (128 MiB); leaves compiler-scratch headroom.
    budget = vmem_budget if vmem_budget is not None else min(cap * 3 // 8, 48 << 20)
    plan = _select_plan(M, K, N, isz, has_bias, budget)

    extra_inputs = ()
    if has_bias:
        extra_inputs = (bias.reshape(G, 1, N),)

    if plan["kind"] == "collapsed":
        tn = plan["tn"]
        grid = (P, N // tn)
        in_specs = [
            # Activations: n-invariant block -> DMA'd once per present group.
            pl.BlockSpec((1, M, K), lambda g, n, ids: (g, 0, 0)),
            # Full-K weight column of the real group ids[g] (lane-dense output).
            pl.BlockSpec((1, K, tn), lambda g, n, ids: (ids[g], 0, n)),
        ]
        if has_bias:
            in_specs.append(
                pl.BlockSpec((1, 1, tn), lambda g, n, ids: (ids[g], 0, n)))
        out_spec = pl.BlockSpec((1, M, tn), lambda g, n, ids: (g, 0, n))
        scratch = []
        kernel = functools.partial(_collapsed_kernel, has_bias=has_bias)
        dim_sem = ("parallel", "parallel")
        x_reads = 1
    else:
        tn, tk, x_res = plan["tn"], plan["tk"], plan["x_resident"]
        grid = (P, N // tn, K // tk)
        if x_res:
            x_spec = pl.BlockSpec((1, M, K), lambda g, n, k, ids: (g, 0, 0))
        else:
            x_spec = pl.BlockSpec((1, M, tk), lambda g, n, k, ids: (g, 0, k))
        in_specs = [
            x_spec,
            pl.BlockSpec((1, tk, tn), lambda g, n, k, ids: (ids[g], k, n)),
        ]
        if has_bias:
            # k-invariant: bias tile DMA'd once per (g, n).
            in_specs.append(
                pl.BlockSpec((1, 1, tn), lambda g, n, k, ids: (ids[g], 0, n)))
        out_spec = pl.BlockSpec((1, M, tn), lambda g, n, k, ids: (g, 0, n))
        scratch = [pltpu.VMEM((M, tn), jnp.float32)]
        kernel = functools.partial(_ktiled_kernel, tk=tk, x_resident=x_res,
                                   has_bias=has_bias)
        dim_sem = ("parallel", "parallel", "arbitrary")
        x_reads = 1 if x_res else (N // tn)

    cost = pl.CostEstimate(
        flops=2 * P * M * N * K,
        transcendentals=0,
        bytes_accessed=int(
            (P * K * N + x_reads * P * M * K + P * M * N
             + (P * N if has_bias else 0)) * isz),
    )
    vmem_limit = int(min(cap, max(plan["bytes"] + (8 << 20), 32 << 20)))

    return pl.pallas_call(
        kernel,
        out_shape=jax.ShapeDtypeStruct((P, M, N), xs_stacked.dtype),
        grid_spec=pltpu.PrefetchScalarGridSpec(
            num_scalar_prefetch=1,
            grid=grid,
            in_specs=in_specs,
            out_specs=out_spec,
            scratch_shapes=scratch,
        ),
        compiler_params=pltpu.CompilerParams(
            dimension_semantics=dim_sem,
            vmem_limit_bytes=vmem_limit,
        ),
        cost_estimate=cost,
    )(group_ids, xs_stacked, weight_t, *extra_inputs)


# -----------------------------------------------------------------------------
# Module
# -----------------------------------------------------------------------------

class GroupRowParallelLinearDeepSeekV3:
    """JAX/Pallas re-implementation of the PyTorch module (tp_size == 1 path).

    Stores ONLY the pre-transposed (G, K, N) weight so the MXU is fed directly
    and HBM holds a single copy of the parameters."""

    def __init__(self, group_size, in_features, out_features, has_bias=True,
                 dtype=jnp.bfloat16, key=None):
        self.group_size = group_size
        self.in_features = in_features
        self.out_features = out_features
        self.has_bias = has_bias
        key = key if key is not None else jax.random.PRNGKey(0)
        kw, kb = jax.random.split(key)
        scale = 1.0 / (in_features ** 0.5)
        w = jax.random.normal(
            kw, (group_size, out_features, in_features), jnp.float32) * scale
        # One-time layout change: PyTorch (G, N, K) -> (G, K, N).
        self.weight_t = jnp.transpose(w, (0, 2, 1)).astype(dtype)
        if has_bias:
            self.bias = (jax.random.normal(kb, (group_size, out_features),
                                           jnp.float32) * 0.01).astype(dtype)
        else:
            self.bias = None

    def forward(self, xs):
        assert len(xs) == self.group_size
        present = [i for i, x in enumerate(xs) if x is not None]
        if not present:
            return [None] * self.group_size
        # TODO(synk): per-group ragged seq lengths (allowed by the PyTorch list
        #             API) are not handled in a single kernel launch.
        xs_stacked = jnp.stack([xs[i] for i in present], axis=0)
        group_ids = jnp.asarray(present, dtype=jnp.int32)
        ys_stacked = group_row_parallel_linear(
            group_ids, xs_stacked, self.weight_t, self.bias,
            has_bias=self.has_bias)
        ys = [None] * self.group_size
        for j, i in enumerate(present):
            ys[i] = ys_stacked[j]
        return ys


if __name__ == "__main__":
    key = jax.random.PRNGKey(0)
    kmod1, kx0, kx2, kmod2, kx3, kx4 = jax.random.split(key, 6)

    # ---- Test 1: small shapes, one absent group, bias, collapsed-K plan ----
    G1, M1, K1, N1 = 3, 8, 32, 32
    mod1 = GroupRowParallelLinearDeepSeekV3(G1, K1, N1, has_bias=True,
                                            dtype=jnp.bfloat16, key=kmod1)
    x0 = jax.random.normal(kx0, (M1, K1), jnp.float32).astype(jnp.bfloat16)
    x2 = jax.random.normal(kx2, (M1, K1), jnp.float32).astype(jnp.bfloat16)
    ys = mod1.forward([x0, None, x2])
    ys = [None if y is None else jax.block_until_ready(y) for y in ys]
    assert ys[1] is None
    for gi, x in ((0, x0), (2, x2)):
        ref = (x.astype(jnp.float32) @ mod1.weight_t[gi].astype(jnp.float32)
               + mod1.bias[gi].astype(jnp.float32)).astype(jnp.bfloat16)
        assert ys[gi].shape == (M1, N1)
        assert jnp.allclose(ys[gi].astype(jnp.float32), ref.astype(jnp.float32),
                            atol=1e-1, rtol=1e-1), f"mismatch in group {gi}"

    # ---- Test 2: no bias, tiny forced VMEM budget -> K-tiled fallback plan ----
    G2, M2, K2, N2 = 2, 16, 256, 256
    mod2 = GroupRowParallelLinearDeepSeekV3(G2, K2, N2, has_bias=False,
                                            dtype=jnp.bfloat16, key=kmod2)
    x3 = jax.random.normal(kx3, (M2, K2), jnp.float32).astype(jnp.bfloat16)
    x4 = jax.random.normal(kx4, (M2, K2), jnp.float32).astype(jnp.bfloat16)
    ys2 = group_row_parallel_linear(
        jnp.arange(G2, dtype=jnp.int32), jnp.stack([x3, x4], axis=0),
        mod2.weight_t, None, has_bias=False, vmem_budget=128 * 1024)
    ys2 = jax.block_until_ready(ys2)
    for gi, x in ((0, x3), (1, x4)):
        ref = (x.astype(jnp.float32)
               @ mod2.weight_t[gi].astype(jnp.float32)).astype(jnp.bfloat16)
        assert jnp.allclose(ys2[gi].astype(jnp.float32), ref.astype(jnp.float32),
                            atol=2e-1, rtol=2e-1), f"mismatch in group {gi}"

    print("KERNEL_OK")
</pallas_src>

<mosaic_0001>
module attributes {stable_mosaic.version = 11 : i64} {
  func.func @_collapsed_kernel(%arg0: i32, %arg1: i32, %arg2: memref<2xi32, #tpu.memory_space<smem>>, %arg3: memref<1x8x32xbf16, #tpu.memory_space<vmem>>, %arg4: memref<1x32x32xbf16, #tpu.memory_space<vmem>>, %arg5: memref<1x1x32xbf16, #tpu.memory_space<vmem>>, %arg6: memref<1x8x32xbf16, #tpu.memory_space<vmem>>) attributes {dimension_semantics = [#tpu.dimension_semantics<parallel>, #tpu.dimension_semantics<parallel>], iteration_bounds = array<i64: 2, 1>, scalar_prefetch = 1 : i64, scratch_operands = 0 : i64, tpu.core_type = #tpu.core_type<tc>, window_params = [{transform_indices = @transform_0, window_bounds = array<i64: 1, 8, 32>}, {transform_indices = @transform_1, window_bounds = array<i64: 1, 32, 32>}, {transform_indices = @transform_2, window_bounds = array<i64: 1, 1, 32>}, {transform_indices = @transform_3, window_bounds = array<i64: 1, 8, 32>}]} {
    %c0 = arith.constant 0 : index
    %c0_0 = arith.constant 0 : index
    %c0_1 = arith.constant 0 : index
    %0 = vector.load %arg3[%c0, %c0_0, %c0_1] : memref<1x8x32xbf16, #tpu.memory_space<vmem>>, vector<1x8x32xbf16>
    %1 = vector.shape_cast %0 : vector<1x8x32xbf16> to vector<8x32xbf16>
    %c0_2 = arith.constant 0 : index
    %c0_3 = arith.constant 0 : index
    %c0_4 = arith.constant 0 : index
    %2 = vector.load %arg4[%c0_2, %c0_3, %c0_4] : memref<1x32x32xbf16, #tpu.memory_space<vmem>>, vector<1x32x32xbf16>
    %3 = vector.shape_cast %2 : vector<1x32x32xbf16> to vector<32x32xbf16>
    %cst = arith.constant dense<0.000000e+00> : vector<8x32xf32>
    %4 = tpu.matmul %1, %3, %cst {dimension_numbers = #tpu.dot_dimension_numbers<[1], [0], [0], [1], [0, 0, 1, 1], [], []>} : vector<8x32xbf16>, vector<32x32xbf16>, vector<8x32xf32> -> vector<8x32xf32>
    %c0_5 = arith.constant 0 : index
    %c0_6 = arith.constant 0 : index
    %c0_7 = arith.constant 0 : index
    %5 = vector.load %arg5[%c0_5, %c0_6, %c0_7] : memref<1x1x32xbf16, #tpu.memory_space<vmem>>, vector<1x1x32xbf16>
    %6 = vector.shape_cast %5 : vector<1x1x32xbf16> to vector<1x32xbf16>
    %7 = arith.extf %6 : vector<1x32xbf16> to vector<1x32xf32>
    %8 = vector.broadcast %7 : vector<1x32xf32> to vector<8x32xf32>
    %9 = arith.addf %4, %8 : vector<8x32xf32>
    %10 = arith.truncf %9 : vector<8x32xf32> to vector<8x32xbf16>
    %c0_8 = arith.constant 0 : index
    %c0_9 = arith.constant 0 : index
    %c0_10 = arith.constant 0 : index
    %11 = vector.load %arg6[%c0_8, %c0_9, %c0_10] : memref<1x8x32xbf16, #tpu.memory_space<vmem>>, vector<1x8x32xbf16>
    %12 = vector.shape_cast %11 : vector<1x8x32xbf16> to vector<8x32xbf16>
    %13 = vector.shape_cast %10 : vector<8x32xbf16> to vector<1x8x32xbf16>
    tpu.vector_store %arg6[%c0_8, %c0_9, %c0_10], %13 {strides = array<i32>} : memref<1x8x32xbf16, #tpu.memory_space<vmem>>, vector<1x8x32xbf16>,
    return
  }
  func.func @transform_0(%arg0: i32, %arg1: i32, %arg2: memref<2xi32, #tpu.memory_space<smem>>) -> (i32, i32, i32) {
    %c0_i32 = arith.constant 0 : i32
    %c0_i32_0 = arith.constant 0 : i32
    %c0_i32_1 = arith.constant 0 : i32
    return %arg0, %c0_i32, %c0_i32_0 : i32, i32, i32
  }
  func.func @transform_1(%arg0: i32, %arg1: i32, %arg2: memref<2xi32, #tpu.memory_space<smem>>) -> (i32, i32, i32) {
    %0 = arith.index_cast %arg0 : i32 to index
    %1 = memref.load %arg2[%0] : memref<2xi32, #tpu.memory_space<smem>>
    %c0_i32 = arith.constant 0 : i32
    %c0_i32_0 = arith.constant 0 : i32
    return %1, %c0_i32, %arg1 : i32, i32, i32
  }
  func.func @transform_2(%arg0: i32, %arg1: i32, %arg2: memref<2xi32, #tpu.memory_space<smem>>) -> (i32, i32, i32) {
    %0 = arith.index_cast %arg0 : i32 to index
    %1 = memref.load %arg2[%0] : memref<2xi32, #tpu.memory_space<smem>>
    %c0_i32 = arith.constant 0 : i32
    %c0_i32_0 = arith.constant 0 : i32
    return %1, %c0_i32, %arg1 : i32, i32, i32
  }
  func.func @transform_3(%arg0: i32, %arg1: i32, %arg2: memref<2xi32, #tpu.memory_space<smem>>) -> (i32, i32, i32) {
    %c0_i32 = arith.constant 0 : i32
    %c0_i32_0 = arith.constant 0 : i32
    return %arg0, %c0_i32, %arg1 : i32, i32, i32
  }
}

</mosaic_0001>

<llo_original>
// kernel: group_row_parallel_linear.1
$region0: #{group_row_parallel_linear.1}
  #allocation0 [shape = 'u32[]', space=smem, size = 0x4, offset = 0x4, fixed_abs, tag = 'smem constant byte address 0x4 - core index']
  #allocation1 [shape = 'u32[144,128]{1,0:T(1,128)}', space=vmem, size = 0x12000, scoped, tag = 'internal scratch']
  #allocation2 [shape = 's32[1]{0}', space=sflag, size = 0x4, scoped, tag = 'scoped memory for group_row_parallel_linear.1']
  #allocation3 [shape = 'u8[512]{0}', space=smem, size = 0x200, scoped, tag = 'prefetched SMEM operand 0']
  %s0 = inlined_call_operand.vmem [shape: s32[2], index: 0, kind: input, shape index: {}]
  %s1 = inlined_call_operand.vmem [shape: bf16[2,8,32], index: 1, kind: input, shape index: {}]
  %s2 = inlined_call_operand.hbm [shape: bf16[3,32,32], index: 2, kind: input, shape index: {}]
  %s3 = inlined_call_operand.vmem [shape: bf16[3,1,32], index: 3, kind: input, shape index: {}]
  %s4 = inlined_call_operand.hbm [shape: bf16[2,8,32], index: 4, kind: output, shape index: {}]
  %s5 = sld [smem:[#allocation0]]
  $region49: #{group_row_parallel_linear.1} parent=0
    _
  %s7 = ssub.s32 1, %s5
  %s8 = scalar_select 0, %s7, %s5
  %s9 = sshll.u32 %s0, 4
  %s10 = int_to_ptr.vmem [resolvable:$true] %s9
  %12 = dma.vmem_to_smem %s10, 16, [#allocation3], [#allocation2]
  %13 = dma.done [#allocation2], 16
  %14 = sfence
  $region1: #{group_row_parallel_linear.1} parent=0
    #allocation4 [shape = 'u8[16384]{0}', space=vmem, size = 0x4000, scoped, tag = 'input window, operand 2']
    #allocation5 [shape = 's32[2]{0}', space=sflag, size = 0x8, scoped, tag = 'scoped memory for group_row_parallel_linear.1']
    #allocation6 [shape = 's32[2]{0}', space=sflag, size = 0x8, scoped, tag = 'scoped memory for group_row_parallel_linear.1']
    #allocation7 [shape = 'u8[4096]{0}', space=vmem, size = 0x1000, scoped, tag = 'output window, operand 0']
    %15 = vsyncpa [#allocation5], 0
    %s16 = scalar_lea.sflag [#allocation5], 1
    %17 = vsyncpa %s16, 0
    %18 = vsyncpa [#allocation6], 0
    %s19 = scalar_lea.sflag [#allocation6], 1
    %20 = vsyncpa %s19, 0
    loop: start=0, step=1, limit=4
    $region2: #{group_row_parallel_linear.1} parent=1 // loop_pre_header
      _
    $region3: #{group_row_parallel_linear.1} parent=1 // loop_header
      %s22 = sphi 0, %s26
      %p23 = scmp.ge.s32.totalorder %s22, 4
      %s29 = sphi 0, %s41
      %s30 = sphi 0, %s37
      %s31 = sphi 0, %s29
      %s32 = sphi 0, %s30
      %s33 = sphi 0, %s31
      %s34 = sphi 0, %s32
      %s44 = sphi 0, %s46
      %s47 = sphi 0, %s44
      %s48 = sphi 0, %s47
      %s64 = sphi 0, %s48
      %s74 = sphi 0, %s76
      %s77 = sphi 0, %s74
      %s78 = sphi 0, %s77
      %s94 = sphi 0, %s78
      %s104 = sphi 0, %s106
      %s107 = sphi 0, %s104
      %s108 = sphi 0, %s107
      %s124 = sphi 0, %s108
      %s132 = sphi 0, %s134
      %s135 = sphi 0, %s132
      %s136 = sphi 0, %s135
      %s152 = sphi 0, %s136
    $region4: #{group_row_parallel_linear.1} parent=1 // loop_header_branch
      %25 = sbr.rel (%p23) target = $region8
    $region5: #{group_row_parallel_linear.1} parent=1 // loop_body
      %s27 = ssub.s32 %s22, 1
      %s28 = ssub.s32 %s22, 2
      %s35 = sadd.s32 1, %s30
      %p36 = scmp.ge.s32.totalorder %s35, 1
      %s37 = scalar_select %p36, 0, %s35
      %s38 = sadd.s32 1, %s29
      %s39 = scalar_select %p36, %s38, %s29
      %p40 = scmp.ge.s32.totalorder %s39, 2
      %s41 = scalar_select %p40, 0, %s39
      %s42 = ssub.s32 %s29, %s41
      %p43 = scmp.eq.s32.totalorder %s42, 0
      %s45 = sadd.s32 %s44, 1
      %s46 = scalar_select %p43, %s44, %s45
      %p49 = pneg %p43
      %p50 = scmp.eq.s32.totalorder %s22, 1
      %p51 = por %p49, %p50
      %p52 = scmp.ne.s32.totalorder %s44, %s47
      %p53 = scmp.eq.s32.totalorder %s22, 0
      %p54 = por %p52, %p53
      %p55 = scmp.ne.s32.totalorder %s44, %s47
      %p56 = scmp.eq.s32.totalorder %s27, 1
      %p57 = por %p55, %p56
      %p58 = scmp.ne.s32.totalorder %s47, %s48
      %p59 = scmp.eq.s32.totalorder %s27, 0
      %p60 = por %p58, %p59
      %p61 = scmp.ne.s32.totalorder %s47, %s48
      %p62 = scmp.eq.s32.totalorder %s28, 1
      %p63 = por %p61, %p62
      %p65 = scmp.ne.s32.totalorder %s48, %s64
      %p66 = scmp.eq.s32.totalorder %s28, 0
      %p67 = por %p65, %p66
      %s68 = sld [smem:[#allocation3 + %s29]]
      %s69 = sld [smem:[#allocation3 + %s41]]
      %s70 = ssub.s32 %s68, %s69
      %s71 = ssub.s32 %s30, %s37
      %s72 = sor.u32 %s70, %s71
      %p73 = scmp.eq.s32.totalorder %s72, 0
      %s75 = sadd.s32 %s74, 1
      %s76 = scalar_select %p73, %s74, %s75
      %p79 = pneg %p73
      %p80 = scmp.eq.s32.totalorder %s22, 1
      %p81 = por %p79, %p80
      %p82 = scmp.ne.s32.totalorder %s74, %s77
      %p83 = scmp.eq.s32.totalorder %s22, 0
      %p84 = por %p82, %p83
      %p85 = scmp.ne.s32.totalorder %s74, %s77
      %p86 = scmp.eq.s32.totalorder %s27, 1
      %p87 = por %p85, %p86
      %p88 = scmp.ne.s32.totalorder %s77, %s78
      %p89 = scmp.eq.s32.totalorder %s27, 0
      %p90 = por %p88, %p89
      %p91 = scmp.ne.s32.totalorder %s77, %s78
      %p92 = scmp.eq.s32.totalorder %s28, 1
      %p93 = por %p91, %p92
      %p95 = scmp.ne.s32.totalorder %s78, %s94
      %p96 = scmp.eq.s32.totalorder %s28, 0
      %p97 = por %p95, %p96
      %s98 = sld [smem:[#allocation3 + %s29]]
      %s99 = sld [smem:[#allocation3 + %s41]]
      %s100 = ssub.s32 %s98, %s99
      %s101 = ssub.s32 %s30, %s37
      %s102 = sor.u32 %s100, %s101
      %p103 = scmp.eq.s32.totalorder %s102, 0
      %s105 = sadd.s32 %s104, 1
      %s106 = scalar_select %p103, %s104, %s105
      %p109 = pneg %p103
      %p110 = scmp.eq.s32.totalorder %s22, 1
      %p111 = por %p109, %p110
      %p112 = scmp.ne.s32.totalorder %s104, %s107
      %p113 = scmp.eq.s32.totalorder %s22, 0
      %p114 = por %p112, %p113
      %p115 = scmp.ne.s32.totalorder %s104, %s107
      %p116 = scmp.eq.s32.totalorder %s27, 1
      %p117 = por %p115, %p116
      %p118 = scmp.ne.s32.totalorder %s107, %s108
      %p119 = scmp.eq.s32.totalorder %s27, 0
      %p120 = por %p118, %p119
      %p121 = scmp.ne.s32.totalorder %s107, %s108
      %p122 = scmp.eq.s32.totalorder %s28, 1
      %p123 = por %p121, %p122
      %p125 = scmp.ne.s32.totalorder %s108, %s124
      %p126 = scmp.eq.s32.totalorder %s28, 0
      %p127 = por %p125, %p126
      %s128 = ssub.s32 %s29, %s41
      %s129 = ssub.s32 %s30, %s37
      %s130 = sor.u32 %s128, %s129
      %p131 = scmp.eq.s32.totalorder %s130, 0
      %s133 = sadd.s32 %s132, 1
      %s134 = scalar_select %p131, %s132, %s133
      %p137 = pneg %p131
      %p138 = scmp.eq.s32.totalorder %s22, 1
      %p139 = por %p137, %p138
      %p140 = scmp.ne.s32.totalorder %s132, %s135
      %p141 = scmp.eq.s32.totalorder %s22, 0
      %p142 = por %p140, %p141
      %p143 = scmp.ne.s32.totalorder %s132, %s135
      %p144 = scmp.eq.s32.totalorder %s27, 1
      %p145 = por %p143, %p144
      %p146 = scmp.ne.s32.totalorder %s135, %s136
      %p147 = scmp.eq.s32.totalorder %s27, 0
      %p148 = por %p146, %p147
      %p149 = scmp.ne.s32.totalorder %s135, %s136
      %p150 = scmp.eq.s32.totalorder %s28, 1
      %p151 = por %p149, %p150
      %p153 = scmp.ne.s32.totalorder %s136, %s152
      %p154 = scmp.eq.s32.totalorder %s28, 0
      %p155 = por %p153, %p154
      %p156 = scmp.le.s32.totalorder 1, %s22
      %p157 = scmp.lt.s32.totalorder %s22, 3
      %p158 = pnand %p156, %p157
      %p159 = pneg %p158
      // Predicated region
      $region9: #{group_row_parallel_linear.1} parent=5 // pred_check
        _
      $region10: #{group_row_parallel_linear.1} parent=5 // pred_check_branch
        %161 = sbr.rel (%p158) target = $region12
      $region11: #{group_row_parallel_linear.1} parent=5 // pred_region
        %s162 = ssub.s32 %s22, 1
      $region12: #{group_row_parallel_linear.1} parent=5 // pred_fallthru
        _
      %p163 = scmp.lt.s32.totalorder %s22, 2
      // Predicated region
      $region13: #{group_row_parallel_linear.1} parent=5 // pred_check
        %p164 = pneg %p163
      $region14: #{group_row_parallel_linear.1} parent=5 // pred_check_branch
        %166 = sbr.rel (%p164) target = $region16
      $region15: #{group_row_parallel_linear.1} parent=5 // pred_region
        // Predicated region
        $region17: #{group_row_parallel_linear.1} parent=15 // pred_check
          %p167 = pneg %p54
        $region18: #{group_row_parallel_linear.1} parent=15 // pred_check_branch
          %169 = sbr.rel (%p167) target = $region20
        $region19: #{group_row_parallel_linear.1} parent=15 // pred_region
          %p170 = scmp.lt.s32.totalorder %s29, 1
          %s171 = scalar_select %p170, %s29, 1
          %s172 = smul.addr %s171, 4
          %s173 = scalar_lea.vmem %s1, %s172
        $region20: #{group_row_parallel_linear.1} parent=15 // pred_fallthru
          _
        // Predicated region
        $region21: #{group_row_parallel_linear.1} parent=15 // pred_check
          %p174 = pneg %p84
        $region22: #{group_row_parallel_linear.1} parent=15 // pred_check_branch
          %176 = sbr.rel (%p174) target = $region24
        $region23: #{group_row_parallel_linear.1} parent=15 // pred_region
          %s177 = sand.u32 %s74, 1
          %s178 = scalar_lea.sflag [#allocation5], %s177
          %s179 = sand.u32 %s74, 1
          %s180 = smul.addr %s179, 16
          %s181 = scalar_lea.vmem [#allocation4], %s180
          %s182 = sld [smem:[#allocation3 + %s29]]
          %s184 = ssub.s32 256, 256
          %185 = vsyncadd %s178, %s184
          %s186 = smul.addr %s182, 4
          %s187 = sadd.s32 %s30, %s186
          %s188 = smul.addr %s187, 64
          %s189 = scalar_lea.hbm %s2, %s188
          %s190 = sshll.u32 %s181, 4
          %s191 = int_to_ptr.vmem [resolvable:$true] %s190
          %196 = dma.hbm_to_vmem [thread:$0]  %s189, 256, %s191, %s178, 64, 64, 4
        $region24: #{group_row_parallel_linear.1} parent=15 // pred_fallthru
          _
        // Predicated region
        $region25: #{group_row_parallel_linear.1} parent=15 // pred_check
          %p197 = pneg %p114
        $region26: #{group_row_parallel_linear.1} parent=15 // pred_check_branch
          %199 = sbr.rel (%p197) target = $region28
        $region27: #{group_row_parallel_linear.1} parent=15 // pred_region
          %s200 = sld [smem:[#allocation3 + %s29]]
          %p201 = scmp.lt.s32.totalorder %s200, 2
          %s202 = scalar_select %p201, %s200, 2
          %p203 = scmp.lt.s32.totalorder %s30, 0
          %s204 = scalar_select %p203, %s30, 0
          %s205 = sadd.s32 %s204, %s202
          %s206 = scalar_lea.vmem %s3, %s205
          %s207 = sld [smem:[#allocation3 + %s29]]
        $region28: #{group_row_parallel_linear.1} parent=15 // pred_fallthru
          _
      $region16: #{group_row_parallel_linear.1} parent=5 // pred_fallthru
        _
      %p208 = scmp.le.s32.totalorder 1, %s22
      %p209 = scmp.lt.s32.totalorder %s22, 3
      %p210 = pnand %p208, %p209
      %p211 = pneg %p210
      // Predicated region
      $region29: #{group_row_parallel_linear.1} parent=5 // pred_check
        _
      $region30: #{group_row_parallel_linear.1} parent=5 // pred_check_branch
        %213 = sbr.rel (%p210) target = $region32
      $region31: #{group_row_parallel_linear.1} parent=5 // pred_region
        %s214 = ssub.s32 %s22, 1
        %s215 = sand.u32 %s77, 1
        %s216 = scalar_lea.sflag [#allocation5], %s215
        %s217 = sand.u32 %s77, 1
        %s218 = smul.addr %s217, 16
        %s219 = scalar_lea.vmem [#allocation4], %s218
        // Predicated region
        $region33: #{group_row_parallel_linear.1} parent=31 // pred_check
          %p220 = pneg %p90
        $region34: #{group_row_parallel_linear.1} parent=31 // pred_check_branch
          %222 = sbr.rel (%p220) target = $region36
        $region35: #{group_row_parallel_linear.1} parent=31 // pred_region
          %223 = dma.done %s216, 256
        $region36: #{group_row_parallel_linear.1} parent=31 // pred_fallthru
          _
        %p224 = scmp.lt.s32.totalorder %s31, 1
        %s225 = scalar_select %p224, %s31, 1
        %s226 = smul.addr %s225, 4
        %s227 = scalar_lea.vmem %s1, %s226
        %p228 = pneg %p60
        %p229 = pneg %p57
        %s230 = sand.u32 %s77, 1
        %s231 = scalar_lea.sflag [#allocation5], %s230
        %s232 = sand.u32 %s77, 1
        %s233 = smul.addr %s232, 16
        %s234 = scalar_lea.vmem [#allocation4], %s233
        %p235 = pneg %p90
        %p236 = pneg %p87
        %s237 = sld [smem:[#allocation3 + %s31]]
        %p238 = scmp.lt.s32.totalorder %s237, 2
        %s239 = scalar_select %p238, %s237, 2
        %p240 = scmp.lt.s32.totalorder %s32, 0
        %s241 = scalar_select %p240, %s32, 0
        %s242 = sadd.s32 %s241, %s239
        %s243 = scalar_lea.vmem %s3, %s242
        %p244 = pneg %p120
        %p245 = pneg %p117
        %p246 = pneg %p148
        %p247 = pneg %p145
        %s248 = sand.u32 %s135, 1
        %s249 = scalar_lea.sflag [#allocation6], %s248
        %s250 = sand.u32 %s135, 1
        %s251 = smul.addr %s250, 4
        %s252 = scalar_lea.vmem [#allocation7], %s251
        %p253 = scmp.lt.s32.totalorder %s31, 1
        %s254 = scalar_select %p253, %s31, 1
        %s255 = smul.addr %s254, 4
        %s256 = scalar_lea.vmem %s1, %s255
        %s257 = sld [smem:[#allocation3 + %s31]]
        %s258 = sld [smem:[#allocation3 + %s31]]
        %p259 = scmp.lt.s32.totalorder %s258, 2
        %s260 = scalar_select %p259, %s258, 2
        %p261 = scmp.lt.s32.totalorder %s32, 0
        %s262 = scalar_select %p261, %s32, 0
        %s263 = sadd.s32 %s262, %s260
        %s264 = scalar_lea.vmem %s3, %s263
        %s265 = sld [smem:[#allocation3 + %s31]]
        %v267 = vld [vmem:[%s256] sm:$0xf]
        %v268 = vld [vmem:[%s219] sm:$0xf]
        %v269 = vld [vmem:[%s219 + $0x4] sm:$0xf]
        %v270 = vld [vmem:[%s219 + $0x8] sm:$0xf]
        %v271 = vld [vmem:[%s219 + $0xc] sm:$0xf]
        %v272 = vld [vmem:[%s264] sm:$0x1]
        %v273 = vunpack.c.l.bf16 %v272
        %v274 = vlaneseq
        %v275 = vshrl.u32 %v274, 7
        %v276 = vsub.s32 0, %v275
        %v277 = vrot.slane %v273, %v276
        %v282 = vunpack.c.l.b16 %v268
        %v283 = vunpack.c.l.b16 %v269
        %v284 = vunpack.c.l.b16 %v270
        %v285 = vunpack.c.l.b16 %v271
        %v286 = vpack.c.b16 %v283, %v282
        %v287 = vpack.c.b16 %v285, %v284
        %vm290 = vcmask 261120
        %v292 = vsel %vm290, %v267, 0
        %294 = vmatprep.subr.bf16.mxu0 0
        %295 = vmatpush1.bf16.msra.mxu0 %v286
        %296 = vmatprep.subr.bf16.mxu0 0
        %297 = vmatpush1.bf16.msra.mxu0 %v287
        %298 = vmatprep.subr.bf16.mxu0 0
        %299 = vmatpush1.bf16.msra.mxu0 0
        %300 = vmatprep.subr.bf16.mxu0 0
        %301 = vmatpush1.bf16.msra.mxu0 0
        %302 = vmatprep.subr.bf16.mxu0 0
        %303 = vmatpush1.bf16.msra.mxu0 0
        %304 = vmatprep.subr.bf16.mxu0 0
        %305 = vmatpush1.bf16.msra.mxu0 0
        %306 = vmatprep.subr.bf16.mxu0 0
        %307 = vmatpush1.bf16.msra.mxu0 0
        %308 = vmatprep.subr.bf16.mxu0 0
        %309 = vmatpush1.bf16.msra.mxu0 0
        %310 = vmatprep.subr.bf16.mxu0 0
        %311 = vmatpush1.bf16.msra.mxu0 0
        %312 = vmatprep.subr.bf16.mxu0 0
        %313 = vmatpush1.bf16.msra.mxu0 0
        %314 = vmatprep.subr.bf16.mxu0 0
        %315 = vmatpush1.bf16.msra.mxu0 0
        %316 = vmatprep.subr.bf16.mxu0 0
        %317 = vmatpush1.bf16.msra.mxu0 0
        %318 = vmatprep.subr.bf16.mxu0 0
        %319 = vmatpush1.bf16.msra.mxu0 0
        %320 = vmatprep.subr.bf16.mxu0 0
        %321 = vmatpush1.bf16.msra.mxu0 0
        %322 = vmatprep.subr.bf16.mxu0 0
        %323 = vmatpush1.bf16.msra.mxu0 0
        %324 = vmatprep.subr.bf16.mxu0 0
        %325 = vmatpush1.bf16.msra.mxu0 0
        %326 = vmatprep.mubr.bf16.mxu0 0
        %327 = vmatmul.mubr.bf16.gmra.mrb[0].mxu0 %v292
        %v328 = vpop.f32.mrb[0].mxu0
        %v329 = vadd.f32 %v277, %v328
        %v330 = vpop.f32.mrb[0].mxu0
        %v331 = vpop.f32.mrb[0].mxu0
        %v332 = vpop.f32.mrb[0].mxu0
        %333 = vdwg.mxu0
        %v334 = vpack.c.bf16 %v329, %v329
        %vm335 = vcmask 257024
        %336 = vst.msk [vmem:[%s252] sm:$0xf] %vm335, %v334
        %s337 = sand.u32 %s135, 1
        %s338 = scalar_lea.sflag [#allocation6], %s337
        %s339 = sand.u32 %s135, 1
        %s340 = smul.addr %s339, 4
        %s341 = scalar_lea.vmem [#allocation7], %s340
        // Predicated region
        $region37: #{group_row_parallel_linear.1} parent=31 // pred_check
          %p342 = pneg %p145
        $region38: #{group_row_parallel_linear.1} parent=31 // pred_check_branch
          %344 = sbr.rel (%p342) target = $region40
        $region39: #{group_row_parallel_linear.1} parent=31 // pred_region
          %s346 = ssub.s32 64, 64
          %347 = vsyncadd %s338, %s346
          %s348 = sadd.s32 %s32, %s31
          %s349 = smul.addr %s348, 64
          %s350 = scalar_lea.hbm %s4, %s349
          %s352 = sshll.u32 %s341, 4
          %s353 = int_to_ptr.vmem [resolvable:$true] %s352
          %355 = dma.vmem_to_hbm [thread:$0]  %s353, 64, %s350, %s338
        $region40: #{group_row_parallel_linear.1} parent=31 // pred_fallthru
          _
      $region32: #{group_row_parallel_linear.1} parent=5 // pred_fallthru
        _
      %p356 = scmp.le.s32.totalorder 2, %s22
      // Predicated region
      $region41: #{group_row_parallel_linear.1} parent=5 // pred_check
        %p357 = pneg %p356
      $region42: #{group_row_parallel_linear.1} parent=5 // pred_check_branch
        %359 = sbr.rel (%p357) target = $region44
      $region43: #{group_row_parallel_linear.1} parent=5 // pred_region
        %s360 = ssub.s32 %s22, 2
        // Predicated region
        $region45: #{group_row_parallel_linear.1} parent=43 // pred_check
          %p361 = pneg %p151
        $region46: #{group_row_parallel_linear.1} parent=43 // pred_check_branch
          %363 = sbr.rel (%p361) target = $region48
        $region47: #{group_row_parallel_linear.1} parent=43 // pred_region
          %s364 = sand.u32 %s136, 1
          %s365 = scalar_lea.sflag [#allocation6], %s364
          %s366 = sand.u32 %s136, 1
          %s367 = smul.addr %s366, 4
          %s368 = scalar_lea.vmem [#allocation7], %s367
          %369 = dma.done %s365, 64
        $region48: #{group_row_parallel_linear.1} parent=43 // pred_fallthru
          _
      $region44: #{group_row_parallel_linear.1} parent=5 // pred_fallthru
        _
    $region6: #{group_row_parallel_linear.1} parent=1 // loop_footer
      %s26 = sadd.s32 1, %s22
    $region7: #{group_row_parallel_linear.1} parent=1 // loop_footer_branch
      %21 = sbr.rel target = $region3
    $region8: #{group_row_parallel_linear.1} parent=1 // loop_exit
      _
    %370 = vsyncpa [#allocation5], 1
    %s371 = scalar_lea.sflag [#allocation5], 1
    %372 = vsyncpa %s371, 1
    %373 = vsyncpa [#allocation6], 1
    %s374 = scalar_lea.sflag [#allocation6], 1
    %375 = vsyncpa %s374, 1

</llo_original>
